<compile_context>
chip_gen: v6e
topology: v6e:2x2x1
jax: 0.10.0
libtpu: 0.0.40
codegen_flags: <defaults>
</compile_context>

<pallas_src>
import jax
import jax.numpy as jnp
from jax.experimental import pallas as pl
from jax.experimental.pallas import tpu as pltpu


def _linear_kernel(x_ref, w_ref, b_ref, o_ref):
    # x_ref: (TM, D); w_ref: (D, N) scale-folded; b_ref: (1, N) scale-folded; o_ref: (TM, N).
    y = jnp.dot(x_ref[...], w_ref[...], preferred_element_type=jnp.float32)
    o_ref[...] = (y + b_ref[...]).astype(o_ref.dtype)


def custom_model_forward(x, w, b, scale):
    """(x @ w + b) * scale, fused in one Pallas kernel.

    x: (B, D), w: (D, N), b: (N,), scale: scalar.  Returns (B, N) float32.
    """
    B, D = x.shape
    N = w.shape[1]

    x = x.astype(jnp.float32)
    scale = jnp.asarray(scale, jnp.float32)

    # Fold the scalar scale into the tiny weight / bias once (this is cheap wrapper work,
    # not the "pre-scale big inputs" anti-pattern): (x@W)*s + b*s == (x@W + b)*s.
    w_s = w.astype(jnp.float32) * scale                   # (D, N)
    b_s = (b.astype(jnp.float32) * scale).reshape(1, N)   # (1, N)

    # Row tile TM:
    #  - largest multiple of 8 whose double-buffered x tiles + double-buffered out tiles
    #    fit a conservative 12 MiB VMEM budget (under v5e's 16 MiB scoped default and
    #    v6e/v7x defaults), so the pipeline stays double-buffered for any D;
    #  - capped at ceil(B/2) so there are >=2 grid steps and the "parallel" axis can
    #    shard across v7x's two TensorCores;
    #  - capped at 2048 rows.
    vmem_budget = 12 * 1024 * 1024
    tm_fit = vmem_budget // (4 * (2 * D + 2 * N))
    tm_fit = max(8, (tm_fit // 8) * 8)
    tm_mc = max(8, ((pl.cdiv(B, 2) + 7) // 8) * 8)
    TM = int(min(tm_fit, 2048, tm_mc))

    grid = (pl.cdiv(B, TM),)

    cost = pl.CostEstimate(
        flops=2 * B * D * N,
        transcendentals=0,
        bytes_accessed=B * D * 4 + B * N * 4 + D * N * 4 + N * 4,
    )

    out = pl.pallas_call(
        _linear_kernel,
        out_shape=jax.ShapeDtypeStruct((B, N), jnp.float32),
        grid=grid,
        in_specs=[
            pl.BlockSpec((TM, D), lambda i: (i, 0)),   # x: streamed over batch (ragged last block is clipped)
            pl.BlockSpec((D, N), lambda i: (0, 0)),    # W (scale-folded): resident, tiny
            pl.BlockSpec((1, N), lambda i: (0, 0)),    # bias (scale-folded): resident, tiny
        ],
        out_specs=pl.BlockSpec((TM, N), lambda i: (i, 0)),
        compiler_params=pltpu.CompilerParams(
            dimension_semantics=("parallel",),          # batch axis shards across v7x's 2 TCs
            vmem_limit_bytes=32 * 1024 * 1024,
        ),
        cost_estimate=cost,
    )(x, w_s, b_s)

    return out


if __name__ == "__main__":
    key = jax.random.PRNGKey(0)
    k_x, k_w, k_b, k_s = jax.random.split(key, 4)

    batch, input_dim, out_dim = 2, 32, 10

    x = jax.random.normal(k_x, (batch, input_dim), dtype=jnp.float32)
    # Parameters match nn.Linear(input_dim, 10) (stored as (D, 10) so kernel does x @ W) + scalar.
    w = jax.random.normal(k_w, (input_dim, out_dim), dtype=jnp.float32) * 0.1
    b = jax.random.normal(k_b, (out_dim,), dtype=jnp.float32) * 0.1
    scale = jax.random.normal(k_s, (), dtype=jnp.float32)

    out = custom_model_forward(x, w, b, scale)
    jax.block_until_ready(out)

    # Reference check in plain JAX.
    ref = (x @ w + b) * scale
    assert out.shape == ref.shape, "shape mismatch vs reference"
    assert jnp.allclose(out, ref, atol=1e-5, rtol=1e-5), "mismatch vs reference"

    print("KERNEL_OK")
</pallas_src>

<mosaic_0001>
module attributes {stable_mosaic.version = 11 : i64} {
  func.func @_linear_kernel(%arg0: i32, %arg1: memref<8x32xf32, #tpu.memory_space<vmem>>, %arg2: memref<32x10xf32, #tpu.memory_space<vmem>>, %arg3: memref<1x10xf32, #tpu.memory_space<vmem>>, %arg4: memref<8x10xf32, #tpu.memory_space<vmem>>) attributes {dimension_semantics = [#tpu.dimension_semantics<parallel>], iteration_bounds = array<i64: 1>, scalar_prefetch = 0 : i64, scratch_operands = 0 : i64, tpu.core_type = #tpu.core_type<tc>, window_params = [{transform_indices = @transform_0, window_bounds = array<i64: 8, 32>}, {pipeline_mode = #tpu.pipeline_mode<synchronous>, transform_indices = @transform_1, window_bounds = array<i64: 32, 10>}, {pipeline_mode = #tpu.pipeline_mode<synchronous>, transform_indices = @transform_2, window_bounds = array<i64: 1, 10>}, {transform_indices = @transform_3, window_bounds = array<i64: 8, 10>}]} {
    %c0 = arith.constant 0 : index
    %c0_0 = arith.constant 0 : index
    %0 = vector.load %arg1[%c0, %c0_0] : memref<8x32xf32, #tpu.memory_space<vmem>>, vector<8x32xf32>
    %c0_1 = arith.constant 0 : index
    %c0_2 = arith.constant 0 : index
    %1 = vector.load %arg2[%c0_1, %c0_2] : memref<32x10xf32, #tpu.memory_space<vmem>>, vector<32x10xf32>
    %cst = arith.constant dense<0.000000e+00> : vector<8x10xf32>
    %2 = tpu.matmul %0, %1, %cst {dimension_numbers = #tpu.dot_dimension_numbers<[1], [0], [0], [1], [0, 0, 1, 1], [], []>} : vector<8x32xf32>, vector<32x10xf32>, vector<8x10xf32> -> vector<8x10xf32>
    %c0_3 = arith.constant 0 : index
    %c0_4 = arith.constant 0 : index
    %3 = vector.load %arg3[%c0_3, %c0_4] : memref<1x10xf32, #tpu.memory_space<vmem>>, vector<1x10xf32>
    %4 = vector.broadcast %3 : vector<1x10xf32> to vector<8x10xf32>
    %5 = arith.addf %2, %4 : vector<8x10xf32>
    %c0_5 = arith.constant 0 : index
    %c0_6 = arith.constant 0 : index
    %6 = vector.load %arg4[%c0_5, %c0_6] : memref<8x10xf32, #tpu.memory_space<vmem>>, vector<8x10xf32>
    tpu.vector_store %arg4[%c0_5, %c0_6], %5 {strides = array<i32>} : memref<8x10xf32, #tpu.memory_space<vmem>>, vector<8x10xf32>,
    return
  }
  func.func @transform_0(%arg0: i32) -> (i32, i32) {
    %c0_i32 = arith.constant 0 : i32
    %c0_i32_0 = arith.constant 0 : i32
    return %arg0, %c0_i32 : i32, i32
  }
  func.func @transform_1(%arg0: i32) -> (i32, i32) {
    %c0_i32 = arith.constant 0 : i32
    %c0_i32_0 = arith.constant 0 : i32
    %c0_i32_1 = arith.constant 0 : i32
    return %c0_i32, %c0_i32_0 : i32, i32
  }
  func.func @transform_2(%arg0: i32) -> (i32, i32) {
    %c0_i32 = arith.constant 0 : i32
    %c0_i32_0 = arith.constant 0 : i32
    %c0_i32_1 = arith.constant 0 : i32
    return %c0_i32, %c0_i32_0 : i32, i32
  }
  func.func @transform_3(%arg0: i32) -> (i32, i32) {
    %c0_i32 = arith.constant 0 : i32
    %c0_i32_0 = arith.constant 0 : i32
    return %arg0, %c0_i32 : i32, i32
  }
}

</mosaic_0001>

<llo_original>
// kernel: tpu_custom_call.1
$region0: #{tpu_custom_call.1}
  #allocation0 [shape = 'u32[]', space=smem, size = 0x4, offset = 0x4, fixed_abs, tag = 'smem constant byte address 0x4 - core index']
  #allocation1 [shape = 'u32[144,128]{1,0:T(1,128)}', space=vmem, size = 0x12000, scoped, tag = 'internal scratch']
  %s0 = inlined_call_operand.vmem [shape: f32[2,32], index: 0, kind: input, shape index: {}]
  %s1 = inlined_call_operand.vmem [shape: f32[32,10], index: 1, kind: input, shape index: {}]
  %s2 = inlined_call_operand.vmem [shape: f32[1,10], index: 2, kind: input, shape index: {}]
  %s3 = inlined_call_operand.hbm [shape: f32[2,10], index: 3, kind: output, shape index: {}]
  %s4 = sld [smem:[#allocation0]]
  $region22: #{tpu_custom_call.1} parent=0
    _
  %s6 = ssub.s32 1, %s4
  %s7 = scalar_select 0, %s6, %s4
  $region1: #{tpu_custom_call.1} parent=0
    #allocation2 [shape = 'u8[4096]{0}', space=vmem, size = 0x1000, scoped, tag = 'output window, operand 0, single buffered']
    #allocation3 [shape = 's32[1]{0}', space=sflag, size = 0x4, scoped, tag = 'scoped memory for tpu_custom_call.1']
    %8 = vsyncpa [#allocation3], 0
    // Predicated region
    $region2: #{tpu_custom_call.1} parent=1 // pred_check
      _
    $region3: #{tpu_custom_call.1} parent=1 // pred_check_branch
      %10 = sbr.rel (0) target = $region5
    $region4: #{tpu_custom_call.1} parent=1 // pred_region
      _
    $region5: #{tpu_custom_call.1} parent=1 // pred_fallthru
      _
    // Predicated region
    $region6: #{tpu_custom_call.1} parent=1 // pred_check
      _
    $region7: #{tpu_custom_call.1} parent=1 // pred_check_branch
      %12 = sbr.rel (0) target = $region9
    $region8: #{tpu_custom_call.1} parent=1 // pred_region
      _
    $region9: #{tpu_custom_call.1} parent=1 // pred_fallthru
      _
    // Predicated region
    $region10: #{tpu_custom_call.1} parent=1 // pred_check
      _
    $region11: #{tpu_custom_call.1} parent=1 // pred_check_branch
      %14 = sbr.rel (0) target = $region13
    $region12: #{tpu_custom_call.1} parent=1 // pred_region
      _
    $region13: #{tpu_custom_call.1} parent=1 // pred_fallthru
      _
    %v15 = vld [vmem:[%s0] sm:$0xff]
    %v16 = vld [vmem:[%s1] sm:$0xff]
    %v17 = vld [vmem:[%s1 + $0x8] sm:$0xff]
    %v18 = vld [vmem:[%s1 + $0x10] sm:$0xff]
    %v19 = vld [vmem:[%s1 + $0x18] sm:$0xff]
    %v20 = vld [vmem:[%s2] sm:$0x1]
    %v22 = vlaneseq
    %v23 = vshrl.u32 %v22, 7
    %v24 = vsub.s32 0, %v23
    %v25 = vrot.slane %v20, %v24
    %vm27 = vcmask 261120
    %v29 = vsel %vm27, %v15, 0
    %31 = vmatprep.subr.mxu0 0.0
    %32 = vmatpush1.msra.mxu0 0.0
    %33 = vmatprep.subr.mxu0 0.0
    %34 = vmatpush1.msra.mxu0 0.0
    %35 = vmatprep.subr.mxu0 0.0
    %36 = vmatpush1.msra.mxu0 0.0
    %37 = vmatprep.subr.mxu0 0.0
    %38 = vmatpush1.msra.mxu0 0.0
    %39 = vmatprep.subr.mxu0 0.0
    %40 = vmatpush1.msra.mxu0 0.0
    %41 = vmatprep.subr.mxu0 0.0
    %42 = vmatpush1.msra.mxu0 0.0
    %43 = vmatprep.subr.mxu0 0.0
    %44 = vmatpush1.msra.mxu0 0.0
    %45 = vmatprep.subr.mxu0 0.0
    %46 = vmatpush1.msra.mxu0 0.0
    %47 = vmatprep.subr.mxu0 0.0
    %48 = vmatpush1.msra.mxu0 0.0
    %49 = vmatprep.subr.mxu0 0.0
    %50 = vmatpush1.msra.mxu0 0.0
    %51 = vmatprep.subr.mxu0 0.0
    %52 = vmatpush1.msra.mxu0 0.0
    %53 = vmatprep.subr.mxu0 0.0
    %54 = vmatpush1.msra.mxu0 0.0
    %55 = vmatprep.subr.mxu0 0.0
    %56 = vmatpush1.msra.mxu0 %v19
    %57 = vmatprep.subr.mxu0 0.0
    %58 = vmatpush1.msra.mxu0 %v18
    %59 = vmatprep.subr.mxu0 0.0
    %60 = vmatpush1.msra.mxu0 %v17
    %61 = vmatprep.subr.mxu0 0.0
    %62 = vmatpush1.msra.mxu0 %v16
    %63 = vmatprep.subr.mxu0 0.0
    %64 = vmatpush2.msra.mxu0 0.0
    %65 = vmatprep.subr.mxu0 0.0
    %66 = vmatpush2.msra.mxu0 0.0
    %67 = vmatprep.subr.mxu0 0.0
    %68 = vmatpush2.msra.mxu0 0.0
    %69 = vmatprep.subr.mxu0 0.0
    %70 = vmatpush2.msra.mxu0 0.0
    %71 = vmatprep.subr.mxu0 0.0
    %72 = vmatpush2.msra.mxu0 0.0
    %73 = vmatprep.subr.mxu0 0.0
    %74 = vmatpush2.msra.mxu0 0.0
    %75 = vmatprep.subr.mxu0 0.0
    %76 = vmatpush2.msra.mxu0 0.0
    %77 = vmatprep.subr.mxu0 0.0
    %78 = vmatpush2.msra.mxu0 0.0
    %79 = vmatprep.subr.mxu0 0.0
    %80 = vmatpush2.msra.mxu0 0.0
    %81 = vmatprep.subr.mxu0 0.0
    %82 = vmatpush2.msra.mxu0 0.0
    %83 = vmatprep.subr.mxu0 0.0
    %84 = vmatpush2.msra.mxu0 0.0
    %85 = vmatprep.subr.mxu0 0.0
    %86 = vmatpush2.msra.mxu0 0.0
    %87 = vmatprep.subr.mxu0 0.0
    %88 = vmatpush2.msra.mxu0 0.0
    %89 = vmatprep.subr.mxu0 0.0
    %90 = vmatpush2.msra.mxu0 0.0
    %91 = vmatprep.subr.mxu0 0.0
    %92 = vmatpush2.msra.mxu0 0.0
    %93 = vmatprep.subr.mxu0 0.0
    %94 = vmatpush2.msra.mxu0 0.0
    %95 = vmatprep.mubr.f32.mxu0 0.0
    %96 = vmatmul.mubr.f32.gmra.mxu0 %v29
    %v97 = vpop.f32.mrf.mxu0
    %v98 = vadd.f32 %v25, %v97
    %v99 = vpop.f32.mrf.mxu0
    %100 = vdwg.mxu0
    %vm101 = vcmask 80896
    %102 = vst.msk [vmem:[#allocation2] sm:$0xff] %vm101, %v98
    // Predicated region
    $region14: #{tpu_custom_call.1} parent=1 // pred_check
      _
    $region15: #{tpu_custom_call.1} parent=1 // pred_check_branch
      %104 = sbr.rel (0) target = $region17
    $region16: #{tpu_custom_call.1} parent=1 // pred_region
      %s106 = ssub.s32 128, 32
      %107 = vsyncadd [#allocation3], %s106
      %s108 = sshll.u32 [#allocation2], 4
      %s109 = int_to_ptr.vmem [resolvable:$true] %s108
      %114 = dma.vmem_to_hbm [thread:$0]  %s109, 32, %s3, [#allocation3], 32, 32, 2
    $region17: #{tpu_custom_call.1} parent=1 // pred_fallthru
      _
    // Predicated region
    $region18: #{tpu_custom_call.1} parent=1 // pred_check
      _
    $region19: #{tpu_custom_call.1} parent=1 // pred_check_branch
      %116 = sbr.rel (0) target = $region21
    $region20: #{tpu_custom_call.1} parent=1 // pred_region
      %117 = dma.done [#allocation3], 128
    $region21: #{tpu_custom_call.1} parent=1 // pred_fallthru
      _
    %118 = vsyncpa [#allocation3], 1

</llo_original>
